<compile_context>
chip_gen: v7x
topology: tpu7x:2x2x1
jax: 0.10.0
libtpu: 0.0.40
codegen_flags: <defaults>
</compile_context>

<pallas_src>
import numpy as np
import jax
import jax.numpy as jnp
from jax import lax
from jax.experimental import pallas as pl
from jax.experimental.pallas import tpu as pltpu


# ----------------------------- tile-size helpers -----------------------------

_LANE = 128
_SUBLANE = 8


def _pick_row_tile(n, c_lanes, itemsize, per_buf_budget=4 << 20, cap=512):
    """Rows per block so a double-buffered (tm, c_lanes) tile stays well inside
    the scoped-VMEM limit on every TPU generation (v5e 16 MiB ... v7x 32/64 MiB)."""
    if n <= _SUBLANE:
        return n
    tm = per_buf_budget // max(1, c_lanes * itemsize)
    tm = min(tm, cap, n)
    if tm >= n:
        return n
    return max(_SUBLANE, (tm // _SUBLANE) * _SUBLANE)


def _pick_col_tile(c, cap=2048):
    """Lane-dense class tile: full C if it is small, else a multiple of 128."""
    if c <= cap:
        return c
    return max(_LANE, (cap // _LANE) * _LANE)


# ----------------------------- Pallas kernels -----------------------------

def _ce_per_row_kernel(pred_ref, tgt_ref, out_ref):
    """Per-row cross-entropy over a (TM, C) logits tile: lse(x) - x[target]."""
    x = pred_ref[...].astype(jnp.float32)                 # (TM, C)
    t = tgt_ref[...]                                      # (TM, 1) int32
    tm, c = x.shape

    # stable logsumexp
    m = jnp.max(x, axis=-1, keepdims=True)                # (TM, 1)
    lse = jnp.log(jnp.sum(jnp.exp(x - m), axis=-1, keepdims=True)) + m

    # fused one-hot gather: no (TM, C) one-hot temporary, one fewer VPU pass
    col = lax.broadcasted_iota(jnp.int32, (tm, c), 1)
    tgt_logit = jnp.sum(jnp.where(col == t, x, 0.0), axis=-1, keepdims=True)

    out_ref[...] = lse - tgt_logit                        # (TM, 1)


def _iif_add_kernel(pred_ref, iif_ref, out_ref):
    """Inference path: out = pred + iif (iif broadcast over the batch dim)."""
    out_ref[...] = pred_ref[...] + iif_ref[...]           # (TM, TC) + (1, TC)


# ----------------------------- Python wrappers -----------------------------

def ce_loss_pallas(pred, targets, block_rows=None):
    n, c = pred.shape
    tgt = targets.reshape(n, 1).astype(jnp.int32)

    tm = block_rows if block_rows is not None else _pick_row_tile(
        n, c, pred.dtype.itemsize)
    tm = min(tm, n)
    if tm < n:
        tm = max(_SUBLANE, (tm // _SUBLANE) * _SUBLANE)
    grid = (pl.cdiv(n, tm),)

    cost = pl.CostEstimate(
        flops=6 * n * c,
        transcendentals=n * c,
        bytes_accessed=n * c * pred.dtype.itemsize + n * 4 + n * 4,
    )

    # NOTE: for very large class counts the full-C row tile should become a
    # (N_tiles, C_tiles) grid with an online logsumexp; not needed at these C.
    per_row = pl.pallas_call(
        _ce_per_row_kernel,
        out_shape=jax.ShapeDtypeStruct((n, 1), jnp.float32),
        grid_spec=pltpu.PrefetchScalarGridSpec(
            num_scalar_prefetch=0,
            grid=grid,
            in_specs=[
                pl.BlockSpec((tm, c), lambda i: (i, 0)),
                pl.BlockSpec((tm, 1), lambda i: (i, 0)),
            ],
            out_specs=pl.BlockSpec((tm, 1), lambda i: (i, 0)),
        ),
        compiler_params=pltpu.CompilerParams(
            dimension_semantics=("parallel",)),
        cost_estimate=cost,
    )(pred, tgt)

    # exact mean over the true batch; out-of-bounds rows of a ragged last tile
    # are never written back, so a plain sum / n is correct.
    return jnp.sum(per_row) / n


def iif_add_pallas(pred, iif_vec, block_rows=None, block_cols=None):
    n, c = pred.shape
    iif2d = iif_vec.reshape(1, c).astype(pred.dtype)

    tc = block_cols if block_cols is not None else _pick_col_tile(c)
    tm = block_rows if block_rows is not None else _pick_row_tile(
        n, tc, pred.dtype.itemsize, cap=1024)
    tm = min(tm, n)
    if tm < n:
        tm = max(_SUBLANE, (tm // _SUBLANE) * _SUBLANE)
    grid = (pl.cdiv(n, tm), pl.cdiv(c, tc))

    cost = pl.CostEstimate(
        flops=n * c,
        transcendentals=0,
        bytes_accessed=2 * n * c * pred.dtype.itemsize + c * iif2d.dtype.itemsize,
    )

    return pl.pallas_call(
        _iif_add_kernel,
        out_shape=jax.ShapeDtypeStruct((n, c), pred.dtype),
        grid_spec=pltpu.PrefetchScalarGridSpec(
            num_scalar_prefetch=0,
            grid=grid,
            in_specs=[
                pl.BlockSpec((tm, tc), lambda i, j: (i, j)),
                pl.BlockSpec((1, tc), lambda i, j: (0, j)),
            ],
            out_specs=pl.BlockSpec((tm, tc), lambda i, j: (i, j)),
        ),
        compiler_params=pltpu.CompilerParams(
            dimension_semantics=("parallel", "parallel")),
        cost_estimate=cost,
    )(pred, iif2d)


# ----------------------------- IIFLoss module -----------------------------

class IIFLossPallas:
    """JAX/Pallas port of IIFLoss.  The iif tables are computed from a
    class-frequency list (stand-in for dataset.get_cls_num_list())."""

    def __init__(self, cls_num_list, variant="rel"):
        self.variant = variant
        freqs = np.asarray(cls_num_list, dtype=np.float64)
        total = freqs.sum()
        iif = {}
        iif["raw"] = np.log(total / freqs)
        iif["smooth"] = np.log((total + 1) / (freqs + 1)) + 1
        iif["rel"] = np.log((total - freqs) / freqs)
        iif["normit"] = -np.asarray(
            jax.scipy.special.ndtri(jnp.asarray(freqs / total, jnp.float32)))
        iif["gombit"] = -np.log(-np.log(1.0 - freqs / total))
        iif["base2"] = np.log2(total / freqs)
        iif["base10"] = np.log10(total / freqs)
        # matches torch.tensor([v]) -> shape (1, C), float32
        self.iif = {k: jnp.asarray(v, jnp.float32).reshape(1, -1)
                    for k, v in iif.items()}

    def __call__(self, pred, targets=None, infer=False):
        if infer is False:
            return ce_loss_pallas(pred, targets)
        else:
            return iif_add_pallas(pred, self.iif[self.variant])


# ----------------------------- main -----------------------------

if __name__ == "__main__":
    key = jax.random.PRNGKey(0)
    N, C = 20, 128  # small; N=20 with 8-row blocks exercises the ragged-tile path

    # deterministic synthetic long-tailed class frequencies
    cls_num_list = [int(1000 // (i + 1)) for i in range(C)]

    k1, k2 = jax.random.split(key)
    pred = jax.random.normal(k1, (N, C), dtype=jnp.float32)
    targets = jax.random.randint(k2, (N,), 0, C, dtype=jnp.int32)

    module = IIFLossPallas(cls_num_list, variant="rel")

    # ---- training path (CrossEntropyLoss) ----
    # explicit 8-row blocks: grid of 3 tiles, last one ragged
    loss = ce_loss_pallas(pred, targets, block_rows=8)
    jax.block_until_ready(loss)

    logp = jax.nn.log_softmax(pred, axis=-1)
    ref_loss = -jnp.mean(logp[jnp.arange(N), targets])
    assert jnp.allclose(loss, ref_loss, atol=1e-5, rtol=1e-5), (loss, ref_loss)

    # module API (auto tile size -> single block at this small shape)
    loss2 = module(pred, targets, infer=False)
    jax.block_until_ready(loss2)
    assert jnp.allclose(loss2, ref_loss, atol=1e-5, rtol=1e-5), (loss2, ref_loss)

    # ---- inference path (pred + iif) ----
    out = iif_add_pallas(pred, module.iif["rel"], block_rows=8)
    jax.block_until_ready(out)
    ref_out = pred + module.iif["rel"]
    assert jnp.allclose(out, ref_out, atol=1e-6, rtol=1e-6)

    out2 = module(pred, infer=True)
    jax.block_until_ready(out2)
    assert jnp.allclose(out2, ref_out, atol=1e-6, rtol=1e-6)

    print("KERNEL_OK")
</pallas_src>

<mosaic_0001>
module attributes {stable_mosaic.version = 11 : i64} {
  func.func @_ce_per_row_kernel(%arg0: i32, %arg1: memref<8x128xf32, #tpu.memory_space<vmem>>, %arg2: memref<8x1xi32, #tpu.memory_space<vmem>>, %arg3: memref<8x1xf32, #tpu.memory_space<vmem>>) attributes {dimension_semantics = [#tpu.dimension_semantics<parallel>], iteration_bounds = array<i64: 3>, scalar_prefetch = 0 : i64, scratch_operands = 0 : i64, tpu.core_type = #tpu.core_type<tc>, window_params = [{transform_indices = @transform_0, window_bounds = array<i64: 8, 128>}, {transform_indices = @transform_1, window_bounds = array<i64: 8, 1>}, {transform_indices = @transform_2, window_bounds = array<i64: 8, 1>}]} {
    %c0 = arith.constant 0 : index
    %c0_0 = arith.constant 0 : index
    %0 = vector.load %arg1[%c0, %c0_0] : memref<8x128xf32, #tpu.memory_space<vmem>>, vector<8x128xf32>
    %c0_1 = arith.constant 0 : index
    %c0_2 = arith.constant 0 : index
    %1 = vector.load %arg2[%c0_1, %c0_2] : memref<8x1xi32, #tpu.memory_space<vmem>>, vector<8x1xi32>
    %cst = arith.constant dense<0xFF800000> : vector<8xf32>
    %2 = vector.multi_reduction <maximumf>, %0, %cst [1] : vector<8x128xf32> to vector<8xf32>
    %3 = vector.shape_cast %2 : vector<8xf32> to vector<8x1xf32>
    %4 = vector.broadcast %3 : vector<8x1xf32> to vector<8x128xf32>
    %5 = arith.subf %0, %4 : vector<8x128xf32>
    %6 = math.exp %5 : vector<8x128xf32>
    %cst_3 = arith.constant dense<0.000000e+00> : vector<8xf32>
    %7 = vector.multi_reduction <add>, %6, %cst_3 [1] : vector<8x128xf32> to vector<8xf32>
    %8 = vector.shape_cast %7 : vector<8xf32> to vector<8x1xf32>
    %9 = math.log %8 : vector<8x1xf32>
    %10 = arith.addf %9, %3 : vector<8x1xf32>
    %11 = tpu.iota {dimensions = array<i32: 1>} : vector<8x128xi32>
    %12 = vector.broadcast %1 : vector<8x1xi32> to vector<8x128xi32>
    %13 = arith.cmpi eq, %11, %12 : vector<8x128xi32>
    %cst_4 = arith.constant 0.000000e+00 : f32
    %14 = vector.broadcast %cst_4 : f32 to vector<8x128xf32>
    %15 = arith.select %13, %0, %14 : vector<8x128xi1>, vector<8x128xf32>
    %cst_5 = arith.constant dense<0.000000e+00> : vector<8xf32>
    %16 = vector.multi_reduction <add>, %15, %cst_5 [1] : vector<8x128xf32> to vector<8xf32>
    %17 = vector.shape_cast %16 : vector<8xf32> to vector<8x1xf32>
    %18 = arith.subf %10, %17 : vector<8x1xf32>
    %c0_6 = arith.constant 0 : index
    %c0_7 = arith.constant 0 : index
    %19 = vector.load %arg3[%c0_6, %c0_7] : memref<8x1xf32, #tpu.memory_space<vmem>>, vector<8x1xf32>
    tpu.vector_store %arg3[%c0_6, %c0_7], %18 {strides = array<i32>} : memref<8x1xf32, #tpu.memory_space<vmem>>, vector<8x1xf32>,
    return
  }
  func.func @transform_0(%arg0: i32) -> (i32, i32) {
    %c0_i32 = arith.constant 0 : i32
    %c0_i32_0 = arith.constant 0 : i32
    return %arg0, %c0_i32 : i32, i32
  }
  func.func @transform_1(%arg0: i32) -> (i32, i32) {
    %c0_i32 = arith.constant 0 : i32
    %c0_i32_0 = arith.constant 0 : i32
    return %arg0, %c0_i32 : i32, i32
  }
  func.func @transform_2(%arg0: i32) -> (i32, i32) {
    %c0_i32 = arith.constant 0 : i32
    %c0_i32_0 = arith.constant 0 : i32
    return %arg0, %c0_i32 : i32, i32
  }
}

</mosaic_0001>

<llo_original>
// kernel: tpu_custom_call.1
$region0: #{tpu_custom_call.1}
  #allocation0 [shape = 'u32[]', space=smem, size = 0x4, offset = 0x4, fixed_abs, tag = 'smem constant byte address 0x4 - core index']
  #allocation1 [shape = 'u32[144,128]{1,0:T(1,128)}', space=vmem, size = 0x12000, scoped, tag = 'internal scratch']
  %s0 = inlined_call_operand.vmem [shape: f32[20,128], index: 0, kind: input, shape index: {}]
  %s1 = inlined_call_operand.vmem [shape: s32[20,1], index: 1, kind: input, shape index: {}]
  %s2 = inlined_call_operand.vmem [shape: f32[20,1], index: 2, kind: output, shape index: {}]
  %s3 = sld [smem:[#allocation0]]
  $region41: #{tpu_custom_call.1} parent=0
    _
  %s5 = ssub.s32 1, %s3
  %s6 = scalar_select 0, %s5, %s3
  loop: start=0, step=1, limit=5
  $region2: #{tpu_custom_call.1} parent=0 // loop_pre_header
    _
  $region3: #{tpu_custom_call.1} parent=0 // loop_header
    %s8 = sphi 0, %s12
    %p9 = scmp.ge.s32.totalorder %s8, 5
    %s18 = sphi 0, %s20
    %s21 = sphi 0, %s18
    %s22 = sphi 0, %s21
    %s38 = sphi 0, %s22
    %s44 = sphi 0, %s46
    %s47 = sphi 0, %s44
    %s48 = sphi 0, %s47
    %s64 = sphi 0, %s48
    %s70 = sphi 0, %s72
    %s73 = sphi 0, %s70
    %s74 = sphi 0, %s73
    %s90 = sphi 0, %s74
  $region4: #{tpu_custom_call.1} parent=0 // loop_header_branch
    %11 = sbr.rel (%p9) target = $region8
  $region5: #{tpu_custom_call.1} parent=0 // loop_body
    %s13 = ssub.s32 %s8, 1
    %s14 = ssub.s32 %s8, 2
    %s15 = sadd.s32 %s8, 1
    %s16 = ssub.s32 %s8, %s15
    %p17 = scmp.eq.s32.totalorder %s16, 0
    %s19 = sadd.s32 %s18, 1
    %s20 = scalar_select %p17, %s18, %s19
    %p23 = pneg %p17
    %p24 = scmp.eq.s32.totalorder %s8, 2
    %p25 = por %p23, %p24
    %p26 = scmp.ne.s32.totalorder %s18, %s21
    %p27 = scmp.eq.s32.totalorder %s8, 0
    %p28 = por %p26, %p27
    %p29 = scmp.ne.s32.totalorder %s18, %s21
    %p30 = scmp.eq.s32.totalorder %s13, 2
    %p31 = por %p29, %p30
    %p32 = scmp.ne.s32.totalorder %s21, %s22
    %p33 = scmp.eq.s32.totalorder %s13, 0
    %p34 = por %p32, %p33
    %p35 = scmp.ne.s32.totalorder %s21, %s22
    %p36 = scmp.eq.s32.totalorder %s14, 2
    %p37 = por %p35, %p36
    %p39 = scmp.ne.s32.totalorder %s22, %s38
    %p40 = scmp.eq.s32.totalorder %s14, 0
    %p41 = por %p39, %p40
    %s42 = ssub.s32 %s8, %s15
    %p43 = scmp.eq.s32.totalorder %s42, 0
    %s45 = sadd.s32 %s44, 1
    %s46 = scalar_select %p43, %s44, %s45
    %p49 = pneg %p43
    %p50 = scmp.eq.s32.totalorder %s8, 2
    %p51 = por %p49, %p50
    %p52 = scmp.ne.s32.totalorder %s44, %s47
    %p53 = scmp.eq.s32.totalorder %s8, 0
    %p54 = por %p52, %p53
    %p55 = scmp.ne.s32.totalorder %s44, %s47
    %p56 = scmp.eq.s32.totalorder %s13, 2
    %p57 = por %p55, %p56
    %p58 = scmp.ne.s32.totalorder %s47, %s48
    %p59 = scmp.eq.s32.totalorder %s13, 0
    %p60 = por %p58, %p59
    %p61 = scmp.ne.s32.totalorder %s47, %s48
    %p62 = scmp.eq.s32.totalorder %s14, 2
    %p63 = por %p61, %p62
    %p65 = scmp.ne.s32.totalorder %s48, %s64
    %p66 = scmp.eq.s32.totalorder %s14, 0
    %p67 = por %p65, %p66
    %s68 = ssub.s32 %s8, %s15
    %p69 = scmp.eq.s32.totalorder %s68, 0
    %s71 = sadd.s32 %s70, 1
    %s72 = scalar_select %p69, %s70, %s71
    %p75 = pneg %p69
    %p76 = scmp.eq.s32.totalorder %s8, 2
    %p77 = por %p75, %p76
    %p78 = scmp.ne.s32.totalorder %s70, %s73
    %p79 = scmp.eq.s32.totalorder %s8, 0
    %p80 = por %p78, %p79
    %p81 = scmp.ne.s32.totalorder %s70, %s73
    %p82 = scmp.eq.s32.totalorder %s13, 2
    %p83 = por %p81, %p82
    %p84 = scmp.ne.s32.totalorder %s73, %s74
    %p85 = scmp.eq.s32.totalorder %s13, 0
    %p86 = por %p84, %p85
    %p87 = scmp.ne.s32.totalorder %s73, %s74
    %p88 = scmp.eq.s32.totalorder %s14, 2
    %p89 = por %p87, %p88
    %p91 = scmp.ne.s32.totalorder %s74, %s90
    %p92 = scmp.eq.s32.totalorder %s14, 0
    %p93 = por %p91, %p92
    %p94 = scmp.le.s32.totalorder 1, %s8
    %p95 = scmp.lt.s32.totalorder %s8, 4
    %p96 = pnand %p94, %p95
    %p97 = pneg %p96
    // Predicated region
    $region9: #{tpu_custom_call.1} parent=5 // pred_check
      _
    $region10: #{tpu_custom_call.1} parent=5 // pred_check_branch
      %99 = sbr.rel (%p96) target = $region12
    $region11: #{tpu_custom_call.1} parent=5 // pred_region
      %s100 = ssub.s32 %s8, 1
    $region12: #{tpu_custom_call.1} parent=5 // pred_fallthru
      _
    %p101 = scmp.lt.s32.totalorder %s8, 3
    // Predicated region
    $region13: #{tpu_custom_call.1} parent=5 // pred_check
      %p102 = pneg %p101
    $region14: #{tpu_custom_call.1} parent=5 // pred_check_branch
      %104 = sbr.rel (%p102) target = $region16
    $region15: #{tpu_custom_call.1} parent=5 // pred_region
      // Predicated region
      $region17: #{tpu_custom_call.1} parent=15 // pred_check
        %p105 = pneg %p28
      $region18: #{tpu_custom_call.1} parent=15 // pred_check_branch
        %107 = sbr.rel (%p105) target = $region20
      $region19: #{tpu_custom_call.1} parent=15 // pred_region
        %p108 = scmp.lt.s32.totalorder %s8, 2
        %s109 = scalar_select %p108, %s8, 2
        %s110 = smul.addr %s109, 8
        %s111 = scalar_lea.vmem %s0, %s110
      $region20: #{tpu_custom_call.1} parent=15 // pred_fallthru
        _
      // Predicated region
      $region21: #{tpu_custom_call.1} parent=15 // pred_check
        %p112 = pneg %p54
      $region22: #{tpu_custom_call.1} parent=15 // pred_check_branch
        %114 = sbr.rel (%p112) target = $region24
      $region23: #{tpu_custom_call.1} parent=15 // pred_region
        %p115 = scmp.lt.s32.totalorder %s8, 2
        %s116 = scalar_select %p115, %s8, 2
        %s117 = smul.addr %s116, 8
        %s118 = scalar_lea.vmem %s1, %s117
      $region24: #{tpu_custom_call.1} parent=15 // pred_fallthru
        _
    $region16: #{tpu_custom_call.1} parent=5 // pred_fallthru
      _
    %p119 = scmp.le.s32.totalorder 1, %s8
    %p120 = scmp.lt.s32.totalorder %s8, 4
    %p121 = pnand %p119, %p120
    %p122 = pneg %p121
    // Predicated region
    $region25: #{tpu_custom_call.1} parent=5 // pred_check
      _
    $region26: #{tpu_custom_call.1} parent=5 // pred_check_branch
      %124 = sbr.rel (%p121) target = $region28
    $region27: #{tpu_custom_call.1} parent=5 // pred_region
      %s125 = ssub.s32 %s8, 1
      %p126 = scmp.lt.s32.totalorder %s13, 2
      %s127 = scalar_select %p126, %s13, 2
      %s128 = smul.addr %s127, 8
      %s129 = scalar_lea.vmem %s0, %s128
      %p130 = pneg %p34
      %p131 = pneg %p31
      %p132 = scmp.lt.s32.totalorder %s13, 2
      %s133 = scalar_select %p132, %s13, 2
      %s134 = smul.addr %s133, 8
      %s135 = scalar_lea.vmem %s1, %s134
      %p136 = pneg %p60
      %p137 = pneg %p57
      %p138 = pneg %p86
      %p139 = pneg %p83
      %p140 = scmp.lt.s32.totalorder %s13, 2
      %s141 = scalar_select %p140, %s13, 2
      %s142 = smul.addr %s141, 8
      %s143 = scalar_lea.vmem %s2, %s142
      %p144 = scmp.lt.s32.totalorder %s13, 2
      %s145 = scalar_select %p144, %s13, 2
      %s146 = smul.addr %s145, 8
      %s147 = scalar_lea.vmem %s0, %s146
      %p148 = scmp.lt.s32.totalorder %s13, 2
      %s149 = scalar_select %p148, %s13, 2
      %s150 = smul.addr %s149, 8
      %s151 = scalar_lea.vmem %s1, %s150
      %p152 = scmp.lt.s32.totalorder %s13, 2
      %s153 = scalar_select %p152, %s13, 2
      %s154 = smul.addr %s153, 8
      %s155 = scalar_lea.vmem %s2, %s154
      %v156 = vld [vmem:[%s147] sm:$0xff]
      %v157 = vld [vmem:[%s151] sm:$0xff]
      %158 = vmax.xlane.f32.xlu0 %v156
      %v159 = vpop.xlane.xlu0 %158
      %v160 = vsub.f32 %v156, %v159
      %v161 = vmul.f32 %v160, 1.442695
      %v162 = vpow.pop %v161
      %163 = vadd.xlane.f32.xlu0 %v162
      %v164 = vpop.xlane.xlu0 %163
      %v165 = vlog2.pop %v164
      %v166 = vmul.f32 %v165, 0.6931472
      %v167 = vadd.f32 %v166, %v159
      %v168 = vlaneseq
      %v169 = vand.u32 %v168, 127
      %170 = vset.pattern.permute.xlu0 0
      %171 = vperm.xlu0 %170, %v157
      %v172 = vpop.permute.xlu0 %171
      %vm173 = vcmp.eq.s32.totalorder %v169, %v172
      %v174 = vsel %vm173, %v156, 0.0
      %175 = vadd.xlane.f32.xlu0 %v174
      %v176 = vpop.xlane.xlu0 %175
      %v177 = vsub.f32 %v167, %v176
      %vm178 = vcmask 7168
      %179 = vst.msk [vmem:[%s155] sm:$0xff] %vm178, %v177
      %p180 = scmp.lt.s32.totalorder %s13, 2
      %s181 = scalar_select %p180, %s13, 2
      %s182 = smul.addr %s181, 8
      %s183 = scalar_lea.vmem %s2, %s182
      // Predicated region
      $region29: #{tpu_custom_call.1} parent=27 // pred_check
        %p184 = pneg %p83
      $region30: #{tpu_custom_call.1} parent=27 // pred_check_branch
        %186 = sbr.rel (%p184) target = $region32
      $region31: #{tpu_custom_call.1} parent=27 // pred_region
        _
      $region32: #{tpu_custom_call.1} parent=27 // pred_fallthru
        _
    $region28: #{tpu_custom_call.1} parent=5 // pred_fallthru
      _
    %p187 = scmp.le.s32.totalorder 2, %s8
    // Predicated region
    $region33: #{tpu_custom_call.1} parent=5 // pred_check
      %p188 = pneg %p187
    $region34: #{tpu_custom_call.1} parent=5 // pred_check_branch
      %190 = sbr.rel (%p188) target = $region36
    $region35: #{tpu_custom_call.1} parent=5 // pred_region
      %s191 = ssub.s32 %s8, 2
      // Predicated region
      $region37: #{tpu_custom_call.1} parent=35 // pred_check
        %p192 = pneg %p89
      $region38: #{tpu_custom_call.1} parent=35 // pred_check_branch
        %194 = sbr.rel (%p192) target = $region40
      $region39: #{tpu_custom_call.1} parent=35 // pred_region
        %p195 = scmp.lt.s32.totalorder %s14, 2
        %s196 = scalar_select %p195, %s14, 2
        %s197 = smul.addr %s196, 8
        %s198 = scalar_lea.vmem %s2, %s197
      $region40: #{tpu_custom_call.1} parent=35 // pred_fallthru
        _
    $region36: #{tpu_custom_call.1} parent=5 // pred_fallthru
      _
  $region6: #{tpu_custom_call.1} parent=0 // loop_footer
    %s12 = sadd.s32 1, %s8
  $region7: #{tpu_custom_call.1} parent=0 // loop_footer_branch
    %7 = sbr.rel target = $region3
  $region8: #{tpu_custom_call.1} parent=0 // loop_exit
    _

</llo_original>
